<compile_context>
chip_gen: v6e
topology: v6e:2x2x1
jax: 0.10.0
libtpu: 0.0.40
codegen_flags: <defaults>
</compile_context>

<pallas_src>
import jax
import jax.numpy as jnp
from jax.experimental import pallas as pl
from jax.experimental.pallas import tpu as pltpu


def span_endpoint_kernel(x_ref, idx_ref, embf_ref, wff3_ref, bias_ref, out_ref):
    """One grid step == one batch element.

    x_ref    : (seq, dim)    bf16   this batch's activations
    idx_ref  : (S, 4)        int32  [b, e_clamped, width, hi]  (sequence-local)
    embf_ref : (msl, ffp)    bf16   embedding table pre-fused with its FF chunk
    wff3_ref : (3*dim, ffp)  bf16   [W_b; W_e; W_avg]
    bias_ref : (1, ffp)      f32
    out_ref  : (S, ffp)      f32
    """
    x = x_ref[...]                                   # (seq, dim) bf16
    idx = idx_ref[...]                               # (S, 4) i32
    seq = x.shape[0]
    s = idx.shape[0]
    msl = embf_ref.shape[0]
    last = seq - 1

    bcol = idx[:, 0:1]                               # begin index
    ecol = idx[:, 1:2]                               # clamped end index
    wcol = idx[:, 2:3]                               # span width e - b
    hicol = idx[:, 3:4]                              # min(e, b + max_width - 1)

    pos = jax.lax.broadcasted_iota(jnp.int32, (s, seq), 1)

    # --- endpoint gathers as one-hot rows (exact in bf16) ---
    onehot_b = (pos == bcol).astype(jnp.bfloat16)
    onehot_e = (pos == ecol).astype(jnp.bfloat16)

    # --- UNnormalized span-average mask, closed form (O(1) in max_width) ---
    # weight 1 on [b, min(hi, seq-2)]; the clamp-overflow count
    # max(0, hi-(seq-1)+1) lands on column seq-1.  Integer-valued -> exact bf16.
    in_range = ((pos >= bcol) & (pos <= hicol) & (pos < last)).astype(jnp.float32)
    ovf = jnp.maximum(hicol - last + 1, 0).astype(jnp.float32)
    avg_mask = (in_range
                + (pos == last).astype(jnp.float32) * ovf).astype(jnp.bfloat16)

    # --- three back-to-back MXU pushes sharing the same RHS ---
    b_vec = jnp.dot(onehot_b, x, preferred_element_type=jnp.float32)   # (S, dim)
    e_vec = jnp.dot(onehot_e, x, preferred_element_type=jnp.float32)   # (S, dim)
    a_raw = jnp.dot(avg_mask, x, preferred_element_type=jnp.float32)   # (S, dim)

    # 1/len normalization AFTER the gather: small (S, dim) multiply, EUP recip.
    len_f = (hicol - bcol + 1).astype(jnp.float32)
    a_vec = a_raw * pl.reciprocal(len_f, approx=True)

    # --- span-width embedding, pre-fused with its FF weight chunk ---
    # TODO(synk): width >= max_span_length yields a zero contribution here,
    # whereas torch nn.Embedding would raise an index error.
    wpos = jax.lax.broadcasted_iota(jnp.int32, (s, msl), 1)
    onehot_w = (wpos == wcol).astype(jnp.bfloat16)
    emb_term = jnp.dot(onehot_w, embf_ref[...], preferred_element_type=jnp.float32)

    # --- fused feed-forward: a single K = 3*dim MXU push ---
    hvec = jnp.concatenate([b_vec, e_vec, a_vec], axis=1).astype(jnp.bfloat16)
    out = (jnp.dot(hvec, wff3_ref[...], preferred_element_type=jnp.float32)
           + emb_term + bias_ref[...])
    # TODO(synk): nn.Dropout is identity in eval mode; training-mode dropout not implemented.
    out_ref[...] = jnp.maximum(out, 0.0).astype(out_ref.dtype)


def span_endpoint(inputs, b, e, embed_tbl, w_ff, bias, *, max_width):
    """inputs:(B,seq,dim), b/e:(B,S) int, embed_tbl:(max_span_len,span_embed),
    w_ff:(2*dim+span_embed+dim, ff_dim), bias:(ff_dim,). Returns (B,S,ff_dim) f32."""
    B, seq, dim = inputs.shape
    S = b.shape[1]
    msl, span_embed = embed_tbl.shape
    ff_dim = w_ff.shape[1]
    ffp = ((ff_dim + 127) // 128) * 128            # lane-dense padded ff width

    # per-span integer bookkeeping (sequence-local indices)
    b = b.astype(jnp.int32)
    e = e.astype(jnp.int32)
    e_cl = jnp.minimum(e, seq - 1)
    width = e - b
    hi = jnp.minimum(e, b + max_width - 1)
    idx = jnp.stack([b, e_cl, width, hi], axis=-1)                      # (B, S, 4)

    x = inputs.astype(jnp.bfloat16)                                     # (B, seq, dim)

    # reorder FF weight to a contiguous [W_b; W_e; W_avg]; fold the embedding
    # chunk into the embedding table (parameters only, done once in f32).
    w_ff = w_ff.astype(jnp.float32)
    w_b = w_ff[0:dim]
    w_e = w_ff[dim:2 * dim]
    w_emb = w_ff[2 * dim:2 * dim + span_embed]
    w_avg = w_ff[2 * dim + span_embed:2 * dim + span_embed + dim]

    pad = ffp - ff_dim
    wff3 = jnp.pad(jnp.concatenate([w_b, w_e, w_avg], axis=0),
                   ((0, 0), (0, pad))).astype(jnp.bfloat16)             # (3*dim, ffp)
    embed_fused = jnp.pad(embed_tbl.astype(jnp.float32) @ w_emb,
                          ((0, 0), (0, pad))).astype(jnp.bfloat16)      # (msl, ffp)
    bias2 = jnp.pad(bias.astype(jnp.float32), (0, pad)).reshape(1, ffp)

    # TODO(synk): for production shapes where seq >> S*(max_width+2), replace the
    # dense per-batch gather with scalar-prefetched row DMA of just the needed rows.
    out = pl.pallas_call(
        span_endpoint_kernel,
        out_shape=jax.ShapeDtypeStruct((B, S, ffp), jnp.float32),
        grid=(B,),
        in_specs=[
            pl.BlockSpec((None, seq, dim), lambda i: (i, 0, 0)),   # this batch's activations
            pl.BlockSpec((None, S, 4), lambda i: (i, 0, 0)),       # this batch's span indices
            pl.BlockSpec((msl, ffp), lambda i: (0, 0)),            # invariant operands
            pl.BlockSpec((3 * dim, ffp), lambda i: (0, 0)),
            pl.BlockSpec((1, ffp), lambda i: (0, 0)),
        ],
        out_specs=pl.BlockSpec((None, S, ffp), lambda i: (i, 0, 0)),
        compiler_params=pltpu.CompilerParams(
            dimension_semantics=("parallel",),      # megacore-shardable on v7x
            vmem_limit_bytes=32 << 20,
        ),
    )(x, idx, embed_fused, wff3, bias2)
    return out[..., :ff_dim]


def ref_forward(inputs, b, e, embed_tbl, w_ff, bias, max_width):
    """Pure-JAX f32 reference mirroring the PyTorch module semantics."""
    seq = inputs.shape[1]
    gather = jax.vmap(lambda x, i: x[i])               # (seq,dim),(...)->(...,dim)
    b_vec = gather(inputs, b)
    e_vec = gather(inputs, jnp.minimum(e, seq - 1))
    emb_vec = embed_tbl[e - b]
    w = jnp.arange(max_width)
    indices = b[:, :, None] + w[None, None, :]
    clamped = jnp.minimum(indices, seq - 1)
    B, S = b.shape
    vectors = gather(inputs, clamped.reshape(B, -1)).reshape(B, S, max_width, -1)
    mask = (indices <= e[:, :, None]).astype(jnp.float32)
    lengths = mask.sum(-1)
    probs = mask / lengths[..., None]
    avg = jnp.einsum('bsw,bswd->bsd', probs, vectors)
    vec = jnp.concatenate([b_vec, e_vec, emb_vec, avg], axis=-1)
    return jnp.maximum(vec @ w_ff + bias, 0.0)


if __name__ == "__main__":
    # small shapes consistent with the module's forward
    B, seq, dim_input = 2, 16, 32
    num_spans, max_width = 8, 4
    max_span_length, span_embed_dim, ff_dim = 8, 16, 64
    dim_pre_ff = 2 * dim_input + span_embed_dim + dim_input   # = 112

    key = jax.random.PRNGKey(0)
    k_in, k_b, k_w, k_emb, k_ff, k_bias = jax.random.split(key, 6)

    inputs = jax.random.normal(k_in, (B, seq, dim_input), dtype=jnp.float32)
    b = jax.random.randint(k_b, (B, num_spans), 0, seq)                    # begin in [0, seq)
    width = jax.random.randint(k_w, (B, num_spans), 0, max_span_length)    # width in [0, max_span_length)
    e = b + width                                                          # may exceed seq-1 -> exercises clamp
    embed_tbl = jax.random.normal(k_emb, (max_span_length, span_embed_dim), dtype=jnp.float32)
    w_ff = jax.random.normal(k_ff, (dim_pre_ff, ff_dim), dtype=jnp.float32) * 0.1
    bias = jax.random.normal(k_bias, (ff_dim,), dtype=jnp.float32) * 0.1

    out = span_endpoint(inputs, b, e, embed_tbl, w_ff, bias, max_width=max_width)
    out = jax.block_until_ready(out)

    ref = ref_forward(inputs, b, e, embed_tbl, w_ff, bias, max_width)
    assert out.shape == (B, num_spans, ff_dim)
    # tolerance reflects bf16 MXU operands (f32 accumulation, approx reciprocal)
    assert jnp.allclose(out, ref, rtol=5e-2, atol=5e-2), (
        f"max abs diff {jnp.max(jnp.abs(out - ref))}")
    print("KERNEL_OK")
</pallas_src>

<mosaic_0001>
module attributes {stable_mosaic.version = 11 : i64} {
  func.func @span_endpoint_kernel(%arg0: i32, %arg1: memref<1x16x32xbf16, #tpu.memory_space<vmem>>, %arg2: memref<1x8x4xi32, #tpu.memory_space<vmem>>, %arg3: memref<8x128xbf16, #tpu.memory_space<vmem>>, %arg4: memref<96x128xbf16, #tpu.memory_space<vmem>>, %arg5: memref<1x128xf32, #tpu.memory_space<vmem>>, %arg6: memref<1x8x128xf32, #tpu.memory_space<vmem>>) attributes {dimension_semantics = [#tpu.dimension_semantics<parallel>], iteration_bounds = array<i64: 2>, scalar_prefetch = 0 : i64, scratch_operands = 0 : i64, tpu.core_type = #tpu.core_type<tc>, window_params = [{transform_indices = @transform_0, window_bounds = array<i64: 1, 16, 32>}, {transform_indices = @transform_1, window_bounds = array<i64: 1, 8, 4>}, {pipeline_mode = #tpu.pipeline_mode<synchronous>, transform_indices = @transform_2, window_bounds = array<i64: 8, 128>}, {pipeline_mode = #tpu.pipeline_mode<synchronous>, transform_indices = @transform_3, window_bounds = array<i64: 96, 128>}, {pipeline_mode = #tpu.pipeline_mode<synchronous>, transform_indices = @transform_4, window_bounds = array<i64: 1, 128>}, {transform_indices = @transform_5, window_bounds = array<i64: 1, 8, 128>}]} {
    %c0 = arith.constant 0 : index
    %c0_0 = arith.constant 0 : index
    %c0_1 = arith.constant 0 : index
    %0 = vector.load %arg1[%c0, %c0_0, %c0_1] : memref<1x16x32xbf16, #tpu.memory_space<vmem>>, vector<1x16x32xbf16>
    %1 = vector.shape_cast %0 : vector<1x16x32xbf16> to vector<16x32xbf16>
    %c0_2 = arith.constant 0 : index
    %c0_3 = arith.constant 0 : index
    %c0_4 = arith.constant 0 : index
    %2 = vector.load %arg2[%c0_2, %c0_3, %c0_4] : memref<1x8x4xi32, #tpu.memory_space<vmem>>, vector<1x8x4xi32>
    %3 = vector.shape_cast %2 : vector<1x8x4xi32> to vector<8x4xi32>
    %4 = vector.extract_strided_slice %3 {offsets = [0, 0], sizes = [8, 1], strides = [1, 1]} : vector<8x4xi32> to vector<8x1xi32>
    %5 = vector.extract_strided_slice %3 {offsets = [0, 1], sizes = [8, 1], strides = [1, 1]} : vector<8x4xi32> to vector<8x1xi32>
    %6 = vector.extract_strided_slice %3 {offsets = [0, 2], sizes = [8, 1], strides = [1, 1]} : vector<8x4xi32> to vector<8x1xi32>
    %7 = vector.extract_strided_slice %3 {offsets = [0, 3], sizes = [8, 1], strides = [1, 1]} : vector<8x4xi32> to vector<8x1xi32>
    %8 = tpu.iota {dimensions = array<i32: 1>} : vector<8x16xi32>
    %9 = vector.broadcast %4 : vector<8x1xi32> to vector<8x16xi32>
    %10 = arith.cmpi eq, %8, %9 : vector<8x16xi32>
    %11 = arith.extui %10 : vector<8x16xi1> to vector<8x16xi32>
    %12 = arith.sitofp %11 : vector<8x16xi32> to vector<8x16xf32>
    %13 = arith.truncf %12 : vector<8x16xf32> to vector<8x16xbf16>
    %14 = vector.broadcast %5 : vector<8x1xi32> to vector<8x16xi32>
    %15 = arith.cmpi eq, %8, %14 : vector<8x16xi32>
    %16 = arith.extui %15 : vector<8x16xi1> to vector<8x16xi32>
    %17 = arith.sitofp %16 : vector<8x16xi32> to vector<8x16xf32>
    %18 = arith.truncf %17 : vector<8x16xf32> to vector<8x16xbf16>
    %19 = vector.broadcast %4 : vector<8x1xi32> to vector<8x16xi32>
    %20 = arith.cmpi sge, %8, %19 : vector<8x16xi32>
    %21 = vector.broadcast %7 : vector<8x1xi32> to vector<8x16xi32>
    %22 = arith.cmpi sle, %8, %21 : vector<8x16xi32>
    %23 = arith.andi %20, %22 : vector<8x16xi1>
    %c15_i32 = arith.constant 15 : i32
    %24 = vector.broadcast %c15_i32 : i32 to vector<8x16xi32>
    %25 = arith.cmpi slt, %8, %24 : vector<8x16xi32>
    %26 = arith.andi %23, %25 : vector<8x16xi1>
    %27 = arith.extui %26 : vector<8x16xi1> to vector<8x16xi32>
    %28 = arith.sitofp %27 : vector<8x16xi32> to vector<8x16xf32>
    %c15_i32_5 = arith.constant 15 : i32
    %29 = vector.broadcast %c15_i32_5 : i32 to vector<8x1xi32>
    %30 = arith.subi %7, %29 : vector<8x1xi32>
    %c1_i32 = arith.constant 1 : i32
    %31 = vector.broadcast %c1_i32 : i32 to vector<8x1xi32>
    %32 = arith.addi %30, %31 : vector<8x1xi32>
    %c0_i32 = arith.constant 0 : i32
    %33 = vector.broadcast %c0_i32 : i32 to vector<8x1xi32>
    %34 = arith.maxsi %32, %33 : vector<8x1xi32>
    %35 = arith.sitofp %34 : vector<8x1xi32> to vector<8x1xf32>
    %c15_i32_6 = arith.constant 15 : i32
    %36 = vector.broadcast %c15_i32_6 : i32 to vector<8x16xi32>
    %37 = arith.cmpi eq, %8, %36 : vector<8x16xi32>
    %38 = arith.extui %37 : vector<8x16xi1> to vector<8x16xi32>
    %39 = arith.sitofp %38 : vector<8x16xi32> to vector<8x16xf32>
    %40 = vector.broadcast %35 : vector<8x1xf32> to vector<8x16xf32>
    %41 = arith.mulf %39, %40 : vector<8x16xf32>
    %42 = arith.addf %28, %41 : vector<8x16xf32>
    %43 = arith.truncf %42 : vector<8x16xf32> to vector<8x16xbf16>
    %cst = arith.constant dense<0.000000e+00> : vector<8x32xf32>
    %44 = tpu.matmul %13, %1, %cst {dimension_numbers = #tpu.dot_dimension_numbers<[1], [0], [0], [1], [0, 0, 1, 1], [], []>} : vector<8x16xbf16>, vector<16x32xbf16>, vector<8x32xf32> -> vector<8x32xf32>
    %cst_7 = arith.constant dense<0.000000e+00> : vector<8x32xf32>
    %45 = tpu.matmul %18, %1, %cst_7 {dimension_numbers = #tpu.dot_dimension_numbers<[1], [0], [0], [1], [0, 0, 1, 1], [], []>} : vector<8x16xbf16>, vector<16x32xbf16>, vector<8x32xf32> -> vector<8x32xf32>
    %cst_8 = arith.constant dense<0.000000e+00> : vector<8x32xf32>
    %46 = tpu.matmul %43, %1, %cst_8 {dimension_numbers = #tpu.dot_dimension_numbers<[1], [0], [0], [1], [0, 0, 1, 1], [], []>} : vector<8x16xbf16>, vector<16x32xbf16>, vector<8x32xf32> -> vector<8x32xf32>
    %47 = arith.subi %7, %4 : vector<8x1xi32>
    %c1_i32_9 = arith.constant 1 : i32
    %48 = vector.broadcast %c1_i32_9 : i32 to vector<8x1xi32>
    %49 = arith.addi %47, %48 : vector<8x1xi32>
    %50 = arith.sitofp %49 : vector<8x1xi32> to vector<8x1xf32>
    %51 = tpu.reciprocal %50 {approx = true} : vector<8x1xf32> -> vector<8x1xf32>
    %52 = vector.broadcast %51 : vector<8x1xf32> to vector<8x32xf32>
    %53 = arith.mulf %46, %52 : vector<8x32xf32>
    %54 = tpu.iota {dimensions = array<i32: 1>} : vector<8x8xi32>
    %55 = vector.broadcast %6 : vector<8x1xi32> to vector<8x8xi32>
    %56 = arith.cmpi eq, %54, %55 : vector<8x8xi32>
    %57 = arith.extui %56 : vector<8x8xi1> to vector<8x8xi32>
    %58 = arith.sitofp %57 : vector<8x8xi32> to vector<8x8xf32>
    %59 = arith.truncf %58 : vector<8x8xf32> to vector<8x8xbf16>
    %c0_10 = arith.constant 0 : index
    %c0_11 = arith.constant 0 : index
    %60 = vector.load %arg3[%c0_10, %c0_11] : memref<8x128xbf16, #tpu.memory_space<vmem>>, vector<8x128xbf16>
    %cst_12 = arith.constant dense<0.000000e+00> : vector<8x128xf32>
    %61 = tpu.matmul %59, %60, %cst_12 {dimension_numbers = #tpu.dot_dimension_numbers<[1], [0], [0], [1], [0, 0, 1, 1], [], []>} : vector<8x8xbf16>, vector<8x128xbf16>, vector<8x128xf32> -> vector<8x128xf32>
    %62 = tpu.concatenate %44, %45, %53 in 1 : vector<8x32xf32>, vector<8x32xf32>, vector<8x32xf32> -> vector<8x96xf32>
    %63 = arith.truncf %62 : vector<8x96xf32> to vector<8x96xbf16>
    %c0_13 = arith.constant 0 : index
    %c0_14 = arith.constant 0 : index
    %64 = vector.load %arg4[%c0_13, %c0_14] : memref<96x128xbf16, #tpu.memory_space<vmem>>, vector<96x128xbf16>
    %cst_15 = arith.constant dense<0.000000e+00> : vector<8x128xf32>
    %65 = tpu.matmul %63, %64, %cst_15 {dimension_numbers = #tpu.dot_dimension_numbers<[1], [0], [0], [1], [0, 0, 1, 1], [], []>} : vector<8x96xbf16>, vector<96x128xbf16>, vector<8x128xf32> -> vector<8x128xf32>
    %66 = arith.addf %65, %61 : vector<8x128xf32>
    %c0_16 = arith.constant 0 : index
    %c0_17 = arith.constant 0 : index
    %67 = vector.load %arg5[%c0_16, %c0_17] : memref<1x128xf32, #tpu.memory_space<vmem>>, vector<1x128xf32>
    %68 = vector.broadcast %67 : vector<1x128xf32> to vector<8x128xf32>
    %69 = arith.addf %66, %68 : vector<8x128xf32>
    %cst_18 = arith.constant 0.000000e+00 : f32
    %70 = vector.broadcast %cst_18 : f32 to vector<8x128xf32>
    %71 = arith.maximumf %69, %70 : vector<8x128xf32>
    %c0_19 = arith.constant 0 : index
    %c0_20 = arith.constant 0 : index
    %c0_21 = arith.constant 0 : index
    %72 = vector.load %arg6[%c0_19, %c0_20, %c0_21] : memref<1x8x128xf32, #tpu.memory_space<vmem>>, vector<1x8x128xf32>
    %73 = vector.shape_cast %72 : vector<1x8x128xf32> to vector<8x128xf32>
    %74 = vector.shape_cast %71 : vector<8x128xf32> to vector<1x8x128xf32>
    tpu.vector_store %arg6[%c0_19, %c0_20, %c0_21], %74 {strides = array<i32>} : memref<1x8x128xf32, #tpu.memory_space<vmem>>, vector<1x8x128xf32>,
    return
  }
  func.func @transform_0(%arg0: i32) -> (i32, i32, i32) {
    %c0_i32 = arith.constant 0 : i32
    %c0_i32_0 = arith.constant 0 : i32
    %c0_i32_1 = arith.constant 0 : i32
    return %arg0, %c0_i32, %c0_i32_0 : i32, i32, i32
  }
  func.func @transform_1(%arg0: i32) -> (i32, i32, i32) {
    %c0_i32 = arith.constant 0 : i32
    %c0_i32_0 = arith.constant 0 : i32
    %c0_i32_1 = arith.constant 0 : i32
    return %arg0, %c0_i32, %c0_i32_0 : i32, i32, i32
  }
  func.func @transform_2(%arg0: i32) -> (i32, i32) {
    %c0_i32 = arith.constant 0 : i32
    %c0_i32_0 = arith.constant 0 : i32
    %c0_i32_1 = arith.constant 0 : i32
    return %c0_i32, %c0_i32_0 : i32, i32
  }
  func.func @transform_3(%arg0: i32) -> (i32, i32) {
    %c0_i32 = arith.constant 0 : i32
    %c0_i32_0 = arith.constant 0 : i32
    %c0_i32_1 = arith.constant 0 : i32
    return %c0_i32, %c0_i32_0 : i32, i32
  }
  func.func @transform_4(%arg0: i32) -> (i32, i32) {
    %c0_i32 = arith.constant 0 : i32
    %c0_i32_0 = arith.constant 0 : i32
    %c0_i32_1 = arith.constant 0 : i32
    return %c0_i32, %c0_i32_0 : i32, i32
  }
  func.func @transform_5(%arg0: i32) -> (i32, i32, i32) {
    %c0_i32 = arith.constant 0 : i32
    %c0_i32_0 = arith.constant 0 : i32
    %c0_i32_1 = arith.constant 0 : i32
    return %arg0, %c0_i32, %c0_i32_0 : i32, i32, i32
  }
}

</mosaic_0001>

<llo_original>
// kernel: tpu_custom_call.1
$region0: #{tpu_custom_call.1}
  #allocation0 [shape = 'u32[]', space=smem, size = 0x4, offset = 0x4, fixed_abs, tag = 'smem constant byte address 0x4 - core index']
  #allocation1 [shape = 'u32[144,128]{1,0:T(1,128)}', space=vmem, size = 0x12000, scoped, tag = 'internal scratch']
  %s0 = inlined_call_operand.vmem [shape: bf16[2,16,32], index: 0, kind: input, shape index: {}]
  %s1 = inlined_call_operand.vmem [shape: s32[2,8,4], index: 1, kind: input, shape index: {}]
  %s2 = inlined_call_operand.vmem [shape: bf16[8,128], index: 2, kind: input, shape index: {}]
  %s3 = inlined_call_operand.hbm [shape: bf16[96,128], index: 3, kind: input, shape index: {}]
  %s4 = inlined_call_operand.vmem [shape: f32[1,128], index: 4, kind: input, shape index: {}]
  %s5 = inlined_call_operand.hbm [shape: f32[2,8,128], index: 5, kind: output, shape index: {}]
  %s6 = sld [smem:[#allocation0]]
  $region57: #{tpu_custom_call.1} parent=0
    _
  %s8 = ssub.s32 1, %s6
  %s9 = scalar_select 0, %s8, %s6
  $region1: #{tpu_custom_call.1} parent=0
    #allocation2 [shape = 'u8[24576]{0}', space=vmem, size = 0x6000, scoped, tag = 'input window, operand 3, single buffered']
    #allocation3 [shape = 's32[2]{0}', space=sflag, size = 0x8, scoped, tag = 'scoped memory for tpu_custom_call.1']
    #allocation4 [shape = 's32[2]{0}', space=sflag, size = 0x8, scoped, tag = 'scoped memory for tpu_custom_call.1']
    #allocation5 [shape = 'u8[8192]{0}', space=vmem, size = 0x2000, scoped, tag = 'output window, operand 0']
    %10 = vsyncpa [#allocation3], 0
    %11 = vsyncpa [#allocation4], 0
    %s12 = scalar_lea.sflag [#allocation4], 1
    %13 = vsyncpa %s12, 0
    loop: start=0, step=1, limit=4
    $region2: #{tpu_custom_call.1} parent=1 // loop_pre_header
      _
    $region3: #{tpu_custom_call.1} parent=1 // loop_header
      %s15 = sphi 0, %s19
      %p16 = scmp.ge.s32.totalorder %s15, 4
      %s25 = sphi 0, %s27
      %s28 = sphi 0, %s25
      %s29 = sphi 0, %s28
      %s45 = sphi 0, %s29
      %s51 = sphi 0, %s53
      %s54 = sphi 0, %s51
      %s55 = sphi 0, %s54
      %s71 = sphi 0, %s55
      %s75 = sphi 0, %s75
      %s77 = sphi 0, %s75
      %s78 = sphi 0, %s77
      %s92 = sphi 0, %s78
      %s96 = sphi 0, %s96
      %s98 = sphi 0, %s96
      %s99 = sphi 0, %s98
      %s113 = sphi 0, %s99
      %s117 = sphi 0, %s117
      %s119 = sphi 0, %s117
      %s120 = sphi 0, %s119
      %s134 = sphi 0, %s120
      %s140 = sphi 0, %s142
      %s143 = sphi 0, %s140
      %s144 = sphi 0, %s143
      %s160 = sphi 0, %s144
    $region4: #{tpu_custom_call.1} parent=1 // loop_header_branch
      %18 = sbr.rel (%p16) target = $region8
    $region5: #{tpu_custom_call.1} parent=1 // loop_body
      %s20 = ssub.s32 %s15, 1
      %s21 = ssub.s32 %s15, 2
      %s22 = sadd.s32 %s15, 1
      %s23 = ssub.s32 %s15, %s22
      %p24 = scmp.eq.s32.totalorder %s23, 0
      %s26 = sadd.s32 %s25, 1
      %s27 = scalar_select %p24, %s25, %s26
      %p30 = pneg %p24
      %p31 = scmp.eq.s32.totalorder %s15, 1
      %p32 = por %p30, %p31
      %p33 = scmp.ne.s32.totalorder %s25, %s28
      %p34 = scmp.eq.s32.totalorder %s15, 0
      %p35 = por %p33, %p34
      %p36 = scmp.ne.s32.totalorder %s25, %s28
      %p37 = scmp.eq.s32.totalorder %s20, 1
      %p38 = por %p36, %p37
      %p39 = scmp.ne.s32.totalorder %s28, %s29
      %p40 = scmp.eq.s32.totalorder %s20, 0
      %p41 = por %p39, %p40
      %p42 = scmp.ne.s32.totalorder %s28, %s29
      %p43 = scmp.eq.s32.totalorder %s21, 1
      %p44 = por %p42, %p43
      %p46 = scmp.ne.s32.totalorder %s29, %s45
      %p47 = scmp.eq.s32.totalorder %s21, 0
      %p48 = por %p46, %p47
      %s49 = ssub.s32 %s15, %s22
      %p50 = scmp.eq.s32.totalorder %s49, 0
      %s52 = sadd.s32 %s51, 1
      %s53 = scalar_select %p50, %s51, %s52
      %p56 = pneg %p50
      %p57 = scmp.eq.s32.totalorder %s15, 1
      %p58 = por %p56, %p57
      %p59 = scmp.ne.s32.totalorder %s51, %s54
      %p60 = scmp.eq.s32.totalorder %s15, 0
      %p61 = por %p59, %p60
      %p62 = scmp.ne.s32.totalorder %s51, %s54
      %p63 = scmp.eq.s32.totalorder %s20, 1
      %p64 = por %p62, %p63
      %p65 = scmp.ne.s32.totalorder %s54, %s55
      %p66 = scmp.eq.s32.totalorder %s20, 0
      %p67 = por %p65, %p66
      %p68 = scmp.ne.s32.totalorder %s54, %s55
      %p69 = scmp.eq.s32.totalorder %s21, 1
      %p70 = por %p68, %p69
      %p72 = scmp.ne.s32.totalorder %s55, %s71
      %p73 = scmp.eq.s32.totalorder %s21, 0
      %p74 = por %p72, %p73
      %s76 = sadd.s32 %s75, 1
      %p79 = scmp.eq.s32.totalorder %s15, 1
      %p80 = scmp.ne.s32.totalorder %s75, %s77
      %p81 = scmp.eq.s32.totalorder %s15, 0
      %p82 = por %p80, %p81
      %p83 = scmp.ne.s32.totalorder %s75, %s77
      %p84 = scmp.eq.s32.totalorder %s20, 1
      %p85 = por %p83, %p84
      %p86 = scmp.ne.s32.totalorder %s77, %s78
      %p87 = scmp.eq.s32.totalorder %s20, 0
      %p88 = por %p86, %p87
      %p89 = scmp.ne.s32.totalorder %s77, %s78
      %p90 = scmp.eq.s32.totalorder %s21, 1
      %p91 = por %p89, %p90
      %p93 = scmp.ne.s32.totalorder %s78, %s92
      %p94 = scmp.eq.s32.totalorder %s21, 0
      %p95 = por %p93, %p94
      %s97 = sadd.s32 %s96, 1
      %p100 = scmp.eq.s32.totalorder %s15, 1
      %p101 = scmp.ne.s32.totalorder %s96, %s98
      %p102 = scmp.eq.s32.totalorder %s15, 0
      %p103 = por %p101, %p102
      %p104 = scmp.ne.s32.totalorder %s96, %s98
      %p105 = scmp.eq.s32.totalorder %s20, 1
      %p106 = por %p104, %p105
      %p107 = scmp.ne.s32.totalorder %s98, %s99
      %p108 = scmp.eq.s32.totalorder %s20, 0
      %p109 = por %p107, %p108
      %p110 = scmp.ne.s32.totalorder %s98, %s99
      %p111 = scmp.eq.s32.totalorder %s21, 1
      %p112 = por %p110, %p111
      %p114 = scmp.ne.s32.totalorder %s99, %s113
      %p115 = scmp.eq.s32.totalorder %s21, 0
      %p116 = por %p114, %p115
      %s118 = sadd.s32 %s117, 1
      %p121 = scmp.eq.s32.totalorder %s15, 1
      %p122 = scmp.ne.s32.totalorder %s117, %s119
      %p123 = scmp.eq.s32.totalorder %s15, 0
      %p124 = por %p122, %p123
      %p125 = scmp.ne.s32.totalorder %s117, %s119
      %p126 = scmp.eq.s32.totalorder %s20, 1
      %p127 = por %p125, %p126
      %p128 = scmp.ne.s32.totalorder %s119, %s120
      %p129 = scmp.eq.s32.totalorder %s20, 0
      %p130 = por %p128, %p129
      %p131 = scmp.ne.s32.totalorder %s119, %s120
      %p132 = scmp.eq.s32.totalorder %s21, 1
      %p133 = por %p131, %p132
      %p135 = scmp.ne.s32.totalorder %s120, %s134
      %p136 = scmp.eq.s32.totalorder %s21, 0
      %p137 = por %p135, %p136
      %s138 = ssub.s32 %s15, %s22
      %p139 = scmp.eq.s32.totalorder %s138, 0
      %s141 = sadd.s32 %s140, 1
      %s142 = scalar_select %p139, %s140, %s141
      %p145 = pneg %p139
      %p146 = scmp.eq.s32.totalorder %s15, 1
      %p147 = por %p145, %p146
      %p148 = scmp.ne.s32.totalorder %s140, %s143
      %p149 = scmp.eq.s32.totalorder %s15, 0
      %p150 = por %p148, %p149
      %p151 = scmp.ne.s32.totalorder %s140, %s143
      %p152 = scmp.eq.s32.totalorder %s20, 1
      %p153 = por %p151, %p152
      %p154 = scmp.ne.s32.totalorder %s143, %s144
      %p155 = scmp.eq.s32.totalorder %s20, 0
      %p156 = por %p154, %p155
      %p157 = scmp.ne.s32.totalorder %s143, %s144
      %p158 = scmp.eq.s32.totalorder %s21, 1
      %p159 = por %p157, %p158
      %p161 = scmp.ne.s32.totalorder %s144, %s160
      %p162 = scmp.eq.s32.totalorder %s21, 0
      %p163 = por %p161, %p162
      %p164 = scmp.le.s32.totalorder 1, %s15
      %p165 = scmp.lt.s32.totalorder %s15, 3
      %p166 = pnand %p164, %p165
      %p167 = pneg %p166
      // Predicated region
      $region9: #{tpu_custom_call.1} parent=5 // pred_check
        _
      $region10: #{tpu_custom_call.1} parent=5 // pred_check_branch
        %169 = sbr.rel (%p166) target = $region12
      $region11: #{tpu_custom_call.1} parent=5 // pred_region
        %s170 = ssub.s32 %s15, 1
        // Predicated region
        $region13: #{tpu_custom_call.1} parent=11 // pred_check
          %p171 = pneg %p88
        $region14: #{tpu_custom_call.1} parent=11 // pred_check_branch
          %173 = sbr.rel (%p171) target = $region16
        $region15: #{tpu_custom_call.1} parent=11 // pred_region
          _
        $region16: #{tpu_custom_call.1} parent=11 // pred_fallthru
          _
        // Predicated region
        $region17: #{tpu_custom_call.1} parent=11 // pred_check
          %p174 = pneg %p109
        $region18: #{tpu_custom_call.1} parent=11 // pred_check_branch
          %176 = sbr.rel (%p174) target = $region20
        $region19: #{tpu_custom_call.1} parent=11 // pred_region
          %s178 = ssub.s32 768, 768
          %179 = vsyncadd [#allocation3], %s178
          %s180 = sshll.u32 [#allocation2], 4
          %s181 = int_to_ptr.vmem [resolvable:$true] %s180
          %186 = dma.hbm_to_vmem [thread:$0]  %s3, 768, %s181, [#allocation3], 64, 64, 4
        $region20: #{tpu_custom_call.1} parent=11 // pred_fallthru
          _
        // Predicated region
        $region21: #{tpu_custom_call.1} parent=11 // pred_check
          %p187 = pneg %p130
        $region22: #{tpu_custom_call.1} parent=11 // pred_check_branch
          %189 = sbr.rel (%p187) target = $region24
        $region23: #{tpu_custom_call.1} parent=11 // pred_region
          _
        $region24: #{tpu_custom_call.1} parent=11 // pred_fallthru
          _
      $region12: #{tpu_custom_call.1} parent=5 // pred_fallthru
        _
      %p190 = scmp.lt.s32.totalorder %s15, 2
      // Predicated region
      $region25: #{tpu_custom_call.1} parent=5 // pred_check
        %p191 = pneg %p190
      $region26: #{tpu_custom_call.1} parent=5 // pred_check_branch
        %193 = sbr.rel (%p191) target = $region28
      $region27: #{tpu_custom_call.1} parent=5 // pred_region
        // Predicated region
        $region29: #{tpu_custom_call.1} parent=27 // pred_check
          %p194 = pneg %p35
        $region30: #{tpu_custom_call.1} parent=27 // pred_check_branch
          %196 = sbr.rel (%p194) target = $region32
        $region31: #{tpu_custom_call.1} parent=27 // pred_region
          %p197 = scmp.lt.s32.totalorder %s15, 1
          %s198 = scalar_select %p197, %s15, 1
          %s199 = smul.addr %s198, 2
          %s200 = smul.addr %s199, 4
          %s201 = scalar_lea.vmem %s0, %s200
        $region32: #{tpu_custom_call.1} parent=27 // pred_fallthru
          _
        // Predicated region
        $region33: #{tpu_custom_call.1} parent=27 // pred_check
          %p202 = pneg %p61
        $region34: #{tpu_custom_call.1} parent=27 // pred_check_branch
          %204 = sbr.rel (%p202) target = $region36
        $region35: #{tpu_custom_call.1} parent=27 // pred_region
          %p205 = scmp.lt.s32.totalorder %s15, 1
          %s206 = scalar_select %p205, %s15, 1
          %s207 = smul.addr %s206, 8
          %s208 = scalar_lea.vmem %s1, %s207
        $region36: #{tpu_custom_call.1} parent=27 // pred_fallthru
          _
      $region28: #{tpu_custom_call.1} parent=5 // pred_fallthru
        _
      %p209 = scmp.le.s32.totalorder 1, %s15
      %p210 = scmp.lt.s32.totalorder %s15, 3
      %p211 = pnand %p209, %p210
      %p212 = pneg %p211
      // Predicated region
      $region37: #{tpu_custom_call.1} parent=5 // pred_check
        _
      $region38: #{tpu_custom_call.1} parent=5 // pred_check_branch
        %214 = sbr.rel (%p211) target = $region40
      $region39: #{tpu_custom_call.1} parent=5 // pred_region
        %s215 = ssub.s32 %s15, 1
        // Predicated region
        $region41: #{tpu_custom_call.1} parent=39 // pred_check
          %p216 = pneg %p109
        $region42: #{tpu_custom_call.1} parent=39 // pred_check_branch
          %218 = sbr.rel (%p216) target = $region44
        $region43: #{tpu_custom_call.1} parent=39 // pred_region
          %219 = dma.done [#allocation3], 768
        $region44: #{tpu_custom_call.1} parent=39 // pred_fallthru
          _
        %p220 = scmp.lt.s32.totalorder %s20, 1
        %s221 = scalar_select %p220, %s20, 1
        %s222 = smul.addr %s221, 2
        %s223 = smul.addr %s222, 4
        %s224 = scalar_lea.vmem %s0, %s223
        %p225 = pneg %p41
        %p226 = pneg %p38
        %p227 = scmp.lt.s32.totalorder %s20, 1
        %s228 = scalar_select %p227, %s20, 1
        %s229 = smul.addr %s228, 8
        %s230 = scalar_lea.vmem %s1, %s229
        %p231 = pneg %p67
        %p232 = pneg %p64
        %p233 = pneg %p88
        %p234 = pneg %p85
        %p235 = pneg %p109
        %p236 = pneg %p106
        %p237 = pneg %p130
        %p238 = pneg %p127
        %p239 = pneg %p156
        %p240 = pneg %p153
        %s241 = sand.u32 %s143, 1
        %s242 = scalar_lea.sflag [#allocation4], %s241
        %s243 = sand.u32 %s143, 1
        %s244 = smul.addr %s243, 8
        %s245 = scalar_lea.vmem [#allocation5], %s244
        %p246 = scmp.lt.s32.totalorder %s20, 1
        %s247 = scalar_select %p246, %s20, 1
        %s248 = smul.addr %s247, 2
        %s249 = smul.addr %s248, 4
        %s250 = scalar_lea.vmem %s0, %s249
        %p251 = scmp.lt.s32.totalorder %s20, 1
        %s252 = scalar_select %p251, %s20, 1
        %s253 = smul.addr %s252, 8
        %s254 = scalar_lea.vmem %s1, %s253
        %v256 = vld [vmem:[%s250] sm:$0xf]
        %v257 = vld [vmem:[%s250 + $0x4] sm:$0xf]
        %v258 = vld [vmem:[%s254] sm:$0xff]
        %v259 = vlaneseq
        %v260 = vand.u32 %v259, 127
        %261 = vset.pattern.permute.xlu0 0
        %262 = vperm.xlu0 %261, %v258
        %v263 = vpop.permute.xlu0 %262
        %vm264 = vcmp.eq.s32.totalorder %v260, %v263
        %v265 = vsel %vm264, 1, 0
        %v266 = vcvt.s32.f32 %v265
        %v267 = vpack.c.bf16 %v266, %v266
        %268 = vset.pattern.permute.xlu0 1
        %269 = vperm.xlu0 %268, %v258
        %v270 = vpop.permute.xlu0 %269
        %vm271 = vcmp.eq.s32.totalorder %v260, %v270
        %v272 = vsel %vm271, 1, 0
        %v273 = vcvt.s32.f32 %v272
        %v274 = vpack.c.bf16 %v273, %v273
        %vm275 = vcmp.ge.s32.totalorder %v260, %v263
        %276 = vset.pattern.permute.xlu0 3
        %277 = vperm.xlu0 %276, %v258
        %v278 = vpop.permute.xlu0 %277
        %vm279 = vcmp.le.s32.totalorder %v260, %v278
        %vm280 = vmand %vm275, %vm279
        %vm281 = vcmp.lt.s32.totalorder %v260, 15
        %vm282 = vmand %vm280, %vm281
        %v283 = vsel %vm282, 1, 0
        %v284 = vcvt.s32.f32 %v283
        %v285 = vsub.s32 %v258, 15
        %v286 = vadd.s32 %v285, 1
        %vm287 = vcmp.gt.s32.totalorder %v286, 0
        %v288 = vsel %vm287, %v286, 0
        %v289 = vcvt.s32.f32 %v288
        %vm290 = vcmp.eq.s32.totalorder %v260, 15
        %v291 = vsel %vm290, 1, 0
        %v292 = vcvt.s32.f32 %v291
        %294 = vset.pattern.permute.xlu0 3
        %295 = vperm.xlu0 %294, %v289
        %v296 = vpop.permute.xlu0 %295
        %v298 = vmul.f32 %v292, %v296
        %v299 = vadd.f32 %v284, %v298
        %v300 = vpack.c.bf16 %v299, %v299
        %v303 = vunpack.c.l.b16 %v256
        %v304 = vunpack.c.l.b16 %v257
        %v305 = vpack.c.b16 %v304, %v303
        %vm307 = vcmask 130048
        %v309 = vsel %vm307, %v267, 0
        %311 = vmatprep.subr.bf16.mxu0 0
        %312 = vmatpush1.bf16.msra.mxu0 0
        %313 = vmatprep.subr.bf16.mxu0 0
        %314 = vmatpush1.bf16.msra.mxu0 0
        %315 = vmatprep.subr.bf16.mxu0 0
        %316 = vmatpush1.bf16.msra.mxu0 0
        %317 = vmatprep.subr.bf16.mxu0 0
        %318 = vmatpush1.bf16.msra.mxu0 0
        %319 = vmatprep.subr.bf16.mxu0 0
        %320 = vmatpush1.bf16.msra.mxu0 0
        %321 = vmatprep.subr.bf16.mxu0 0
        %322 = vmatpush1.bf16.msra.mxu0 0
        %323 = vmatprep.subr.bf16.mxu0 0
        %324 = vmatpush1.bf16.msra.mxu0 0
        %325 = vmatprep.subr.bf16.mxu0 0
        %326 = vmatpush1.bf16.msra.mxu0 %v305
        %327 = vmatprep.subr.bf16.mxu0 0
        %328 = vmatpush2.bf16.msra.mxu0 0
        %329 = vmatprep.subr.bf16.mxu0 0
        %330 = vmatpush2.bf16.msra.mxu0 0
        %331 = vmatprep.subr.bf16.mxu0 0
        %332 = vmatpush2.bf16.msra.mxu0 0
        %333 = vmatprep.subr.bf16.mxu0 0
        %334 = vmatpush2.bf16.msra.mxu0 0
        %335 = vmatprep.subr.bf16.mxu0 0
        %336 = vmatpush2.bf16.msra.mxu0 0
        %337 = vmatprep.subr.bf16.mxu0 0
        %338 = vmatpush2.bf16.msra.mxu0 0
        %339 = vmatprep.subr.bf16.mxu0 0
        %340 = vmatpush2.bf16.msra.mxu0 0
        %341 = vmatprep.subr.bf16.mxu0 0
        %342 = vmatpush2.bf16.msra.mxu0 0
        %343 = vmatprep.mubr.bf16.mxu0 0
        %344 = vmatmul.mubr.bf16.gmra.mxu0 %v309
        %v345 = vpop.f32.mrf.mxu0
        %v346 = vadd.f32 0.0, %v345
        %v347 = vpop.f32.mrf.mxu0
        %v348 = vpop.f32.mrf.mxu0
        %v349 = vpop.f32.mrf.mxu0
        %350 = vdwg.mxu0
        %v352 = vsel %vm307, %v274, 0
        %354 = vmatprep.subr.bf16.mxu0 0
        %355 = vmatpush1.bf16.msra.mxu0 0
        %356 = vmatprep.subr.bf16.mxu0 0
        %357 = vmatpush1.bf16.msra.mxu0 0
        %358 = vmatprep.subr.bf16.mxu0 0
        %359 = vmatpush1.bf16.msra.mxu0 0
        %360 = vmatprep.subr.bf16.mxu0 0
        %361 = vmatpush1.bf16.msra.mxu0 0
        %362 = vmatprep.subr.bf16.mxu0 0
        %363 = vmatpush1.bf16.msra.mxu0 0
        %364 = vmatprep.subr.bf16.mxu0 0
        %365 = vmatpush1.bf16.msra.mxu0 0
        %366 = vmatprep.subr.bf16.mxu0 0
        %367 = vmatpush1.bf16.msra.mxu0 0
        %368 = vmatprep.subr.bf16.mxu0 0
        %369 = vmatpush1.bf16.msra.mxu0 %v305
        %370 = vmatprep.subr.bf16.mxu0 0
        %371 = vmatpush2.bf16.msra.mxu0 0
        %372 = vmatprep.subr.bf16.mxu0 0
        %373 = vmatpush2.bf16.msra.mxu0 0
        %374 = vmatprep.subr.bf16.mxu0 0
        %375 = vmatpush2.bf16.msra.mxu0 0
        %376 = vmatprep.subr.bf16.mxu0 0
        %377 = vmatpush2.bf16.msra.mxu0 0
        %378 = vmatprep.subr.bf16.mxu0 0
        %379 = vmatpush2.bf16.msra.mxu0 0
        %380 = vmatprep.subr.bf16.mxu0 0
        %381 = vmatpush2.bf16.msra.mxu0 0
        %382 = vmatprep.subr.bf16.mxu0 0
        %383 = vmatpush2.bf16.msra.mxu0 0
        %384 = vmatprep.subr.bf16.mxu0 0
        %385 = vmatpush2.bf16.msra.mxu0 0
        %386 = vmatprep.mubr.bf16.mxu0 0
        %387 = vmatmul.mubr.bf16.gmra.mxu0 %v352
        %v388 = vpop.f32.mrf.mxu0
        %v389 = vadd.f32 0.0, %v388
        %v390 = vpop.f32.mrf.mxu0
        %v391 = vpop.f32.mrf.mxu0
        %v392 = vpop.f32.mrf.mxu0
        %393 = vdwg.mxu0
        %v395 = vsel %vm307, %v300, 0
        %397 = vmatprep.subr.bf16.mxu0 0
        %398 = vmatpush1.bf16.msra.mxu0 0
        %399 = vmatprep.subr.bf16.mxu0 0
        %400 = vmatpush1.bf16.msra.mxu0 0
        %401 = vmatprep.subr.bf16.mxu0 0
        %402 = vmatpush1.bf16.msra.mxu0 0
        %403 = vmatprep.subr.bf16.mxu0 0
        %404 = vmatpush1.bf16.msra.mxu0 0
        %405 = vmatprep.subr.bf16.mxu0 0
        %406 = vmatpush1.bf16.msra.mxu0 0
        %407 = vmatprep.subr.bf16.mxu0 0
        %408 = vmatpush1.bf16.msra.mxu0 0
        %409 = vmatprep.subr.bf16.mxu0 0
        %410 = vmatpush1.bf16.msra.mxu0 0
        %411 = vmatprep.subr.bf16.mxu0 0
        %412 = vmatpush1.bf16.msra.mxu0 %v305
        %413 = vmatprep.subr.bf16.mxu0 0
        %414 = vmatpush2.bf16.msra.mxu0 0
        %415 = vmatprep.subr.bf16.mxu0 0
        %416 = vmatpush2.bf16.msra.mxu0 0
        %417 = vmatprep.subr.bf16.mxu0 0
        %418 = vmatpush2.bf16.msra.mxu0 0
        %419 = vmatprep.subr.bf16.mxu0 0
        %420 = vmatpush2.bf16.msra.mxu0 0
        %421 = vmatprep.subr.bf16.mxu0 0
        %422 = vmatpush2.bf16.msra.mxu0 0
        %423 = vmatprep.subr.bf16.mxu0 0
        %424 = vmatpush2.bf16.msra.mxu0 0
        %425 = vmatprep.subr.bf16.mxu0 0
        %426 = vmatpush2.bf16.msra.mxu0 0
        %427 = vmatprep.subr.bf16.mxu0 0
        %428 = vmatpush2.bf16.msra.mxu0 0
        %429 = vmatprep.mubr.bf16.mxu0 0
        %430 = vmatmul.mubr.bf16.gmra.mxu0 %v395
        %v431 = vpop.f32.mrf.mxu0
        %v432 = vadd.f32 0.0, %v431
        %v433 = vpop.f32.mrf.mxu0
        %v434 = vpop.f32.mrf.mxu0
        %v435 = vpop.f32.mrf.mxu0
        %436 = vdwg.mxu0
        %437 = vrot.lane.b32.xlu0 %v258, 3
        %v438 = vpop.permute.xlu0 %437
        %v439 = vsub.s32 %v258, %v438
        %v440 = vadd.s32 %v439, 1
        %v441 = vcvt.s32.f32 %v440
        %v442 = vrcp.pop %v441
        %444 = vset.pattern.permute.xlu0 3
        %445 = vperm.xlu0 %444, %v442
        %v446 = vpop.permute.xlu0 %445
        %v448 = vmul.f32 %v432, %v446
        %449 = vset.pattern.permute.xlu0 2
        %450 = vperm.xlu0 %449, %v258
        %v451 = vpop.permute.xlu0 %450
        %vm452 = vcmp.eq.s32.totalorder %v260, %v451
        %v453 = vsel %vm452, 1, 0
        %v454 = vcvt.s32.f32 %v453
        %v455 = vpack.c.bf16 %v454, %v454
        %v456 = vld [vmem:[%s2] sm:$0xf]
        %vm457 = vcmask 64512
        %v459 = vsel %vm457, %v455, 0
        %vm461 = vcmask 1043456
        %v463 = vsel %vm461, %v456, 0
        %465 = vmatprep.subr.bf16.mxu0 0
        %466 = vmatpush1.bf16.msra.mxu0 0
        %467 = vmatprep.subr.bf16.mxu0 0
        %468 = vmatpush1.bf16.msra.mxu0 0
        %469 = vmatprep.subr.bf16.mxu0 0
        %470 = vmatpush1.bf16.msra.mxu0 0
        %471 = vmatprep.subr.bf16.mxu0 0
        %472 = vmatpush1.bf16.msra.mxu0 0
        %473 = vmatprep.subr.bf16.mxu0 0
        %474 = vmatpush1.bf16.msra.mxu0 0
        %475 = vmatprep.subr.bf16.mxu0 0
        %476 = vmatpush1.bf16.msra.mxu0 0
        %477 = vmatprep.subr.bf16.mxu0 0
        %478 = vmatpush1.bf16.msra.mxu0 0
        %479 = vmatprep.subr.bf16.mxu0 0
        %480 = vmatpush1.bf16.msra.mxu0 %v463
        %481 = vmatprep.subr.bf16.mxu0 0
        %482 = vmatpush2.bf16.msra.mxu0 0
        %483 = vmatprep.subr.bf16.mxu0 0
        %484 = vmatpush2.bf16.msra.mxu0 0
        %485 = vmatprep.subr.bf16.mxu0 0
        %486 = vmatpush2.bf16.msra.mxu0 0
        %487 = vmatprep.subr.bf16.mxu0 0
        %488 = vmatpush2.bf16.msra.mxu0 0
        %489 = vmatprep.subr.bf16.mxu0 0
        %490 = vmatpush2.bf16.msra.mxu0 0
        %491 = vmatprep.subr.bf16.mxu0 0
        %492 = vmatpush2.bf16.msra.mxu0 0
        %493 = vmatprep.subr.bf16.mxu0 0
        %494 = vmatpush2.bf16.msra.mxu0 0
        %495 = vmatprep.subr.bf16.mxu0 0
        %496 = vmatpush2.bf16.msra.mxu0 0
        %497 = vmatprep.mubr.bf16.mxu0 0
        %498 = vmatmul.mubr.bf16.gmra.mxu0 %v459
        %v499 = vpop.f32.mrf.mxu0
        %v500 = vadd.f32 0.0, %v499
        %v501 = vpop.f32.mrf.mxu0
        %v502 = vpop.f32.mrf.mxu0
        %v503 = vpop.f32.mrf.mxu0
        %504 = vdwg.mxu0
        %506 = vrot.lane.b32.xlu0 %v389, 32
        %v507 = vpop.permute.xlu0 %506
        %510 = vrot.lane.b32.xlu0 %v448, 64
        %v511 = vpop.permute.xlu0 %510
        %vm513 = vcmask 261120
        %v514 = vsel %vm513, %v346, %v507
        %vm515 = vcmask 523264
        %v516 = vsel %vm515, %v514, %v511
        %v517 = vpack.c.bf16 %v516, %v516
        %v518 = vld [vmem:[#allocation2] sm:$0xf]
        %v519 = vld [vmem:[#allocation2 + $0x4] sm:$0xf]
        %v520 = vld [vmem:[#allocation2 + $0x8] sm:$0xf]
        %v521 = vld [vmem:[#allocation2 + $0xc] sm:$0xf]
        %v522 = vld [vmem:[#allocation2 + $0x10] sm:$0xf]
        %v523 = vld [vmem:[#allocation2 + $0x14] sm:$0xf]
        %v524 = vld [vmem:[#allocation2 + $0x18] sm:$0xf]
        %v525 = vld [vmem:[#allocation2 + $0x1c] sm:$0xf]
        %v526 = vld [vmem:[#allocation2 + $0x20] sm:$0xf]
        %v527 = vld [vmem:[#allocation2 + $0x24] sm:$0xf]
        %v528 = vld [vmem:[#allocation2 + $0x28] sm:$0xf]
        %v529 = vld [vmem:[#allocation2 + $0x2c] sm:$0xf]
        %v542 = vunpack.c.l.b16 %v518
        %v543 = vunpack.c.l.b16 %v519
        %v544 = vunpack.c.l.b16 %v520
        %v545 = vunpack.c.l.b16 %v521
        %v546 = vunpack.c.l.b16 %v522
        %v547 = vunpack.c.l.b16 %v523
        %v548 = vunpack.c.l.b16 %v524
        %v549 = vunpack.c.l.b16 %v525
        %v550 = vunpack.c.l.b16 %v526
        %v551 = vunpack.c.l.b16 %v527
        %v552 = vunpack.c.l.b16 %v528
        %v553 = vunpack.c.l.b16 %v529
        %v554 = vpack.c.b16 %v543, %v542
        %v555 = vpack.c.b16 %v545, %v544
        %v556 = vpack.c.b16 %v547, %v546
        %v557 = vpack.c.b16 %v549, %v548
        %v558 = vpack.c.b16 %v551, %v550
        %v559 = vpack.c.b16 %v553, %v552
        %vm566 = vcmask 785408
        %v568 = vsel %vm566, %v517, 0
        %570 = vmatprep.subr.bf16.mxu0 0
        %571 = vmatpush1.bf16.msra.mxu0 0
        %572 = vmatprep.subr.bf16.mxu0 0
        %573 = vmatpush1.bf16.msra.mxu0 0
        %574 = vmatprep.subr.bf16.mxu0 0
        %575 = vmatpush1.bf16.msra.mxu0 %v559
        %576 = vmatprep.subr.bf16.mxu0 0
        %577 = vmatpush1.bf16.msra.mxu0 %v558
        %578 = vmatprep.subr.bf16.mxu0 0
        %579 = vmatpush1.bf16.msra.mxu0 %v557
        %580 = vmatprep.subr.bf16.mxu0 0
        %581 = vmatpush1.bf16.msra.mxu0 %v556
        %582 = vmatprep.subr.bf16.mxu0 0
        %583 = vmatpush1.bf16.msra.mxu0 %v555
        %584 = vmatprep.subr.bf16.mxu0 0
        %585 = vmatpush1.bf16.msra.mxu0 %v554
        %586 = vmatprep.subr.bf16.mxu0 0
        %587 = vmatpush2.bf16.msra.mxu0 0
        %588 = vmatprep.subr.bf16.mxu0 0
        %589 = vmatpush2.bf16.msra.mxu0 0
        %590 = vmatprep.subr.bf16.mxu0 0
        %591 = vmatpush2.bf16.msra.mxu0 0
        %592 = vmatprep.subr.bf16.mxu0 0
        %593 = vmatpush2.bf16.msra.mxu0 0
        %594 = vmatprep.subr.bf16.mxu0 0
        %595 = vmatpush2.bf16.msra.mxu0 0
        %596 = vmatprep.subr.bf16.mxu0 0
        %597 = vmatpush2.bf16.msra.mxu0 0
        %598 = vmatprep.subr.bf16.mxu0 0
        %599 = vmatpush2.bf16.msra.mxu0 0
        %600 = vmatprep.subr.bf16.mxu0 0
        %601 = vmatpush2.bf16.msra.mxu0 0
        %602 = vmatprep.mubr.bf16.mxu0 0
        %603 = vmatmul.mubr.bf16.gmra.mxu0 %v568
        %v604 = vpop.f32.mrf.mxu0
        %v605 = vadd.f32 %v500, %v604
        %v606 = vpop.f32.mrf.mxu0
        %v607 = vpop.f32.mrf.mxu0
        %v608 = vpop.f32.mrf.mxu0
        %609 = vdwg.mxu0
        %v610 = vld [vmem:[%s4] sm:$0x1]
        %v612 = vlaneseq
        %v613 = vshrl.u32 %v612, 7
        %v614 = vsub.s32 0, %v613
        %v615 = vrot.slane %v610, %v614
        %v617 = vadd.f32 %v605, %v615
        %v618 = vmax.f32 %v617, 0.0
        %619 = vst [vmem:[%s245] sm:$0xff] %v618
        %s620 = sand.u32 %s143, 1
        %s621 = scalar_lea.sflag [#allocation4], %s620
        %s622 = sand.u32 %s143, 1
        %s623 = smul.addr %s622, 8
        %s624 = scalar_lea.vmem [#allocation5], %s623
        // Predicated region
        $region45: #{tpu_custom_call.1} parent=39 // pred_check
          %p625 = pneg %p153
        $region46: #{tpu_custom_call.1} parent=39 // pred_check_branch
          %627 = sbr.rel (%p625) target = $region48
        $region47: #{tpu_custom_call.1} parent=39 // pred_region
          %s629 = ssub.s32 128, 128
          %630 = vsyncadd %s621, %s629
          %s631 = smul.addr %s20, 128
          %s632 = scalar_lea.hbm %s5, %s631
          %s634 = sshll.u32 %s624, 4
          %s635 = int_to_ptr.vmem [resolvable:$true] %s634
          %637 = dma.vmem_to_hbm [thread:$0]  %s635, 128, %s632, %s621
        $region48: #{tpu_custom_call.1} parent=39 // pred_fallthru
          _
      $region40: #{tpu_custom_call.1} parent=5 // pred_fallthru
        _
      %p638 = scmp.le.s32.totalorder 2, %s15
      // Predicated region
      $region49: #{tpu_custom_call.1} parent=5 // pred_check
        %p639 = pneg %p638
      $region50: #{tpu_custom_call.1} parent=5 // pred_check_branch
        %641 = sbr.rel (%p639) target = $region52
      $region51: #{tpu_custom_call.1} parent=5 // pred_region
        %s642 = ssub.s32 %s15, 2
        // Predicated region
        $region53: #{tpu_custom_call.1} parent=51 // pred_check
          %p643 = pneg %p159
        $region54: #{tpu_custom_call.1} parent=51 // pred_check_branch
          %645 = sbr.rel (%p643) target = $region56
        $region55: #{tpu_custom_call.1} parent=51 // pred_region
          %s646 = sand.u32 %s144, 1
          %s647 = scalar_lea.sflag [#allocation4], %s646
          %s648 = sand.u32 %s144, 1
          %s649 = smul.addr %s648, 8
          %s650 = scalar_lea.vmem [#allocation5], %s649
          %651 = dma.done %s647, 128
        $region56: #{tpu_custom_call.1} parent=51 // pred_fallthru
          _
      $region52: #{tpu_custom_call.1} parent=5 // pred_fallthru
        _
    $region6: #{tpu_custom_call.1} parent=1 // loop_footer
      %s19 = sadd.s32 1, %s15
    $region7: #{tpu_custom_call.1} parent=1 // loop_footer_branch
      %14 = sbr.rel target = $region3
    $region8: #{tpu_custom_call.1} parent=1 // loop_exit
      _
    %652 = vsyncpa [#allocation3], 1
    %s653 = scalar_lea.sflag [#allocation3], 1
    %654 = vsyncpa %s653, 1
    %655 = vsyncpa [#allocation4], 1
    %s656 = scalar_lea.sflag [#allocation4], 1
    %657 = vsyncpa %s656, 1

</llo_original>
